<compile_context>
chip_gen: v5e
topology: v5e:2x2
jax: 0.10.0
libtpu: 0.0.40
codegen_flags: <defaults>
</compile_context>

<pallas_src>
import jax
import jax.numpy as jnp
from jax import lax
from jax.experimental import pallas as pl
from jax.experimental.pallas import tpu as pltpu

F_IN = 64
F_OUT = 64
F_OUT_PAD = 128  # lane-dense output width (multiple of 128 lanes)


def linear_relu_kernel(x_ref, w_ref, b_ref, o_ref):
    # x_ref: (B, F_in); w_ref: (F_in, F_OUT_PAD) canonical (K, N) layout;
    # b_ref: (1, F_OUT_PAD); o_ref: (B, F_OUT_PAD)
    acc = lax.dot_general(
        x_ref[...], w_ref[...],
        dimension_numbers=(((1,), (0,)), ((), ())),   # (M,K) x (K,N)
        preferred_element_type=jnp.float32,
    )
    o_ref[...] = jnp.maximum(acc + b_ref[...], 0.0).astype(o_ref.dtype)


@jax.jit
def linear_relu(x, weight_kn_pad, bias2d_pad):
    """x: (B, F_in) f32; weight_kn_pad: (F_in, F_OUT_PAD) f32 (pre-transposed,
    zero-padded at init); bias2d_pad: (1, F_OUT_PAD) f32 (zero-padded)."""
    B, _ = x.shape
    n_pad = weight_kn_pad.shape[1]
    out_pad = pl.pallas_call(
        linear_relu_kernel,
        out_shape=jax.ShapeDtypeStruct((B, n_pad), x.dtype),
        # Blockless call: whole arrays resident in VMEM, no grid machinery.
        in_specs=[
            pl.BlockSpec(memory_space=pltpu.MemorySpace.VMEM),
            pl.BlockSpec(memory_space=pltpu.MemorySpace.VMEM),
            pl.BlockSpec(memory_space=pltpu.MemorySpace.VMEM),
        ],
        out_specs=pl.BlockSpec(memory_space=pltpu.MemorySpace.VMEM),
        cost_estimate=pl.CostEstimate(
            flops=2 * B * F_IN * n_pad,
            bytes_accessed=4 * (B * F_IN + F_IN * n_pad + n_pad + B * n_pad),
            transcendentals=0,
        ),
    )(x, weight_kn_pad, bias2d_pad)
    # Drop the zero-padded columns outside the kernel (cheap XLA slice).
    return out_pad[:, :F_OUT]


def reference(x, weight_pt, bias):
    # PyTorch semantics: relu(x @ W^T + b), W in (F_out, F_in) layout.
    return jnp.maximum(x @ weight_pt.T + bias[None, :], 0.0)


if __name__ == "__main__":
    key = jax.random.PRNGKey(0)
    kx, kw, kb = jax.random.split(key, 3)

    # Module-implied shapes: input (1, 64), Linear(64, 64)
    x = jax.random.normal(kx, (1, F_IN), dtype=jnp.float32)

    # Deterministic init mimicking nn.Linear uniform(-1/sqrt(64), 1/sqrt(64)),
    # in PyTorch's native (F_out, F_in) layout.
    bound = 1.0 / jnp.sqrt(float(F_IN))
    weight_pt = jax.random.uniform(kw, (F_OUT, F_IN), minval=-bound, maxval=bound,
                                   dtype=jnp.float32)
    bias = jax.random.uniform(kb, (F_OUT,), minval=-bound, maxval=bound,
                              dtype=jnp.float32)

    # One-time parameter prep (init-time, not per-call):
    #   transpose to canonical (K, N) and zero-pad N: 64 -> 128.
    weight_kn_pad = (
        jnp.zeros((F_IN, F_OUT_PAD), jnp.float32).at[:, :F_OUT].set(weight_pt.T)
    )
    bias2d_pad = (
        jnp.zeros((1, F_OUT_PAD), jnp.float32).at[:, :F_OUT].set(bias)
    )

    out = linear_relu(x, weight_kn_pad, bias2d_pad)
    out = jax.block_until_ready(out)

    ref = reference(x, weight_pt, bias)
    assert out.shape == (1, F_OUT)
    assert jnp.allclose(out, ref, atol=1e-5, rtol=1e-5)

    print("KERNEL_OK")
</pallas_src>

<mosaic_0001>
module attributes {stable_mosaic.version = 11 : i64} {
  func.func @linear_relu_kernel(%arg0: memref<1x64xf32, #tpu.memory_space<vmem>>, %arg1: memref<64x128xf32, #tpu.memory_space<vmem>>, %arg2: memref<1x128xf32, #tpu.memory_space<vmem>>, %arg3: memref<1x128xf32, #tpu.memory_space<vmem>>) attributes {dimension_semantics = [], scalar_prefetch = 0 : i64, scratch_operands = 0 : i64, tpu.core_type = #tpu.core_type<tc>} {
    %c0 = arith.constant 0 : index
    %c0_0 = arith.constant 0 : index
    %0 = vector.load %arg0[%c0, %c0_0] : memref<1x64xf32, #tpu.memory_space<vmem>>, vector<1x64xf32>
    %c0_1 = arith.constant 0 : index
    %c0_2 = arith.constant 0 : index
    %1 = vector.load %arg1[%c0_1, %c0_2] : memref<64x128xf32, #tpu.memory_space<vmem>>, vector<64x128xf32>
    %cst = arith.constant dense<0.000000e+00> : vector<1x128xf32>
    %2 = tpu.matmul %0, %1, %cst {dimension_numbers = #tpu.dot_dimension_numbers<[1], [0], [0], [1], [0, 0, 1, 1], [], []>} : vector<1x64xf32>, vector<64x128xf32>, vector<1x128xf32> -> vector<1x128xf32>
    %c0_3 = arith.constant 0 : index
    %c0_4 = arith.constant 0 : index
    %3 = vector.load %arg2[%c0_3, %c0_4] : memref<1x128xf32, #tpu.memory_space<vmem>>, vector<1x128xf32>
    %4 = arith.addf %2, %3 : vector<1x128xf32>
    %cst_5 = arith.constant 0.000000e+00 : f32
    %5 = vector.broadcast %cst_5 : f32 to vector<1x128xf32>
    %6 = arith.maximumf %4, %5 : vector<1x128xf32>
    %c0_6 = arith.constant 0 : index
    %c0_7 = arith.constant 0 : index
    %7 = vector.load %arg3[%c0_6, %c0_7] : memref<1x128xf32, #tpu.memory_space<vmem>>, vector<1x128xf32>
    tpu.vector_store %arg3[%c0_6, %c0_7], %6 {strides = array<i32>} : memref<1x128xf32, #tpu.memory_space<vmem>>, vector<1x128xf32>,
    return
  }
}

</mosaic_0001>

<llo_original>
// kernel: linear_relu.1
$region0: #{linear_relu.1}
  #allocation0 [shape = 'u32[]', space=smem, size = 0x4, offset = 0x4, fixed_abs, tag = 'smem constant byte address 0x4 - core index']
  #allocation1 [shape = 'u32[72,128]{1,0:T(1,128)}', space=vmem, size = 0x9000, scoped, tag = 'internal scratch']
  %s0 = inlined_call_operand.hbm [shape: f32[1,64], index: 0, kind: input, shape index: {}]
  %s1 = inlined_call_operand.hbm [shape: f32[64,128], index: 1, kind: input, shape index: {}]
  %s2 = inlined_call_operand.vmem [shape: f32[1,128], index: 2, kind: input, shape index: {}]
  %s3 = inlined_call_operand.hbm [shape: f32[1,128], index: 3, kind: output, shape index: {}]
  %s4 = sld [smem:[#allocation0]]
  $region30: #{linear_relu.1} parent=0
    _
  %s6 = ssub.s32 1, %s4
  %s7 = scalar_select 0, %s6, %s4
  $region1: #{linear_relu.1} parent=0
    #allocation2 [shape = 'u8[512]{0}', space=vmem, size = 0x400, scoped, tag = 'input window, operand 0, single buffered']
    #allocation3 [shape = 's32[1]{0}', space=sflag, size = 0x4, scoped, tag = 'scoped memory for linear_relu.1']
    #allocation4 [shape = 's32[1]{0}', space=sflag, size = 0x4, scoped, tag = 'scoped memory for linear_relu.1']
    #allocation5 [shape = 'u8[32768]{0}', space=vmem, size = 0x8000, scoped, tag = 'input window, operand 1, single buffered']
    #allocation6 [shape = 's32[1]{0}', space=sflag, size = 0x4, scoped, tag = 'scoped memory for linear_relu.1']
    #allocation7 [shape = 'u8[512]{0}', space=vmem, size = 0x400, scoped, tag = 'output window, operand 0, single buffered']
    %8 = vsyncpa [#allocation3], 0
    %9 = vsyncpa [#allocation6], 0
    %10 = vsyncpa [#allocation4], 0
    // Predicated region
    $region2: #{linear_relu.1} parent=1 // pred_check
      _
    $region3: #{linear_relu.1} parent=1 // pred_check_branch
      %12 = sbr.rel (0) target = $region5
    $region4: #{linear_relu.1} parent=1 // pred_region
      %14 = vsyncadd [#allocation3], 0
      %s16 = sshll.u32 %s0, 4
      %s17 = int_to_ptr.hbm [resolvable:$true] %s16
      %s18 = sshll.u32 [#allocation2], 4
      %s19 = int_to_ptr.vmem [resolvable:$true] %s18
      %21 = dma.hbm_to_vmem [thread:$0]  %s17, 16, %s19, [#allocation3]
    $region5: #{linear_relu.1} parent=1 // pred_fallthru
      _
    // Predicated region
    $region6: #{linear_relu.1} parent=1 // pred_check
      _
    $region7: #{linear_relu.1} parent=1 // pred_check_branch
      %23 = sbr.rel (0) target = $region9
    $region8: #{linear_relu.1} parent=1 // pred_region
      %25 = vsyncadd [#allocation6], 0
      %s26 = sshll.u32 %s1, 4
      %s27 = int_to_ptr.hbm [resolvable:$true] %s26
      %s28 = sshll.u32 [#allocation5], 4
      %s29 = int_to_ptr.vmem [resolvable:$true] %s28
      %34 = dma.hbm_to_vmem [thread:$0]  %s27, 1024, %s29, [#allocation6], 128, 128, 8
    $region9: #{linear_relu.1} parent=1 // pred_fallthru
      _
    // Predicated region
    $region10: #{linear_relu.1} parent=1 // pred_check
      _
    $region11: #{linear_relu.1} parent=1 // pred_check_branch
      %36 = sbr.rel (0) target = $region13
    $region12: #{linear_relu.1} parent=1 // pred_region
      _
    $region13: #{linear_relu.1} parent=1 // pred_fallthru
      _
    // Predicated region
    $region14: #{linear_relu.1} parent=1 // pred_check
      _
    $region15: #{linear_relu.1} parent=1 // pred_check_branch
      %38 = sbr.rel (0) target = $region17
    $region16: #{linear_relu.1} parent=1 // pred_region
      %40 = dma.done [#allocation3], 16
    $region17: #{linear_relu.1} parent=1 // pred_fallthru
      _
    // Predicated region
    $region18: #{linear_relu.1} parent=1 // pred_check
      _
    $region19: #{linear_relu.1} parent=1 // pred_check_branch
      %42 = sbr.rel (0) target = $region21
    $region20: #{linear_relu.1} parent=1 // pred_region
      %44 = dma.done [#allocation6], 1024
    $region21: #{linear_relu.1} parent=1 // pred_fallthru
      _
    %v45 = vld [vmem:[#allocation2] sm:$0x1]
    %v46 = vld [vmem:[#allocation5] sm:$0xff]
    %v47 = vld [vmem:[#allocation5 + $0x8] sm:$0xff]
    %v48 = vld [vmem:[#allocation5 + $0x10] sm:$0xff]
    %v49 = vld [vmem:[#allocation5 + $0x18] sm:$0xff]
    %v50 = vld [vmem:[#allocation5 + $0x20] sm:$0xff]
    %v51 = vld [vmem:[#allocation5 + $0x28] sm:$0xff]
    %v52 = vld [vmem:[#allocation5 + $0x30] sm:$0xff]
    %v53 = vld [vmem:[#allocation5 + $0x38] sm:$0xff]
    %v54 = vld [vmem:[%s2] sm:$0x1]
    %vm55 = vcmask 523264
    %v57 = vsel %vm55, %v45, 0
    %59 = vmatpush.msra.mxu0 0.0
    %60 = vmatpush.msra.mxu0 0.0
    %61 = vmatpush.msra.mxu0 0.0
    %62 = vmatpush.msra.mxu0 0.0
    %63 = vmatpush.msra.mxu0 0.0
    %64 = vmatpush.msra.mxu0 0.0
    %65 = vmatpush.msra.mxu0 0.0
    %66 = vmatpush.msra.mxu0 0.0
    %67 = vmatpush.msra.mxu0 %v53
    %68 = vmatpush.msra.mxu0 %v52
    %69 = vmatpush.msra.mxu0 %v51
    %70 = vmatpush.msra.mxu0 %v50
    %71 = vmatpush.msra.mxu0 %v49
    %72 = vmatpush.msra.mxu0 %v48
    %73 = vmatpush.msra.mxu0 %v47
    %74 = vmatpush.msra.mxu0 %v46
    %75 = vmatmul.f32.gmra.mxu0 %v57
    %v76 = vpop.f32.mrf.mxu0
    %v77 = vadd.f32 %v54, %v76
    %78 = vdwg.mxu0
    %v79 = vmax.f32 %v77, 0.0
    %80 = vst [vmem:[#allocation7] sm:$0x1] %v79
    // Predicated region
    $region22: #{linear_relu.1} parent=1 // pred_check
      _
    $region23: #{linear_relu.1} parent=1 // pred_check_branch
      %82 = sbr.rel (0) target = $region25
    $region24: #{linear_relu.1} parent=1 // pred_region
      %84 = vsyncadd [#allocation4], 0
      %s86 = sshll.u32 [#allocation7], 4
      %s87 = int_to_ptr.vmem [resolvable:$true] %s86
      %s88 = sshll.u32 %s3, 4
      %s89 = int_to_ptr.hbm [resolvable:$true] %s88
      %91 = dma.vmem_to_hbm [thread:$0]  %s87, 16, %s89, [#allocation4]
    $region25: #{linear_relu.1} parent=1 // pred_fallthru
      _
    // Predicated region
    $region26: #{linear_relu.1} parent=1 // pred_check
      _
    $region27: #{linear_relu.1} parent=1 // pred_check_branch
      %93 = sbr.rel (0) target = $region29
    $region28: #{linear_relu.1} parent=1 // pred_region
      %95 = dma.done [#allocation4], 16
    $region29: #{linear_relu.1} parent=1 // pred_fallthru
      _
    %96 = vsyncpa [#allocation3], 1
    %97 = vsyncpa [#allocation6], 1
    %98 = vsyncpa [#allocation4], 1

</llo_original>
